<compile_context>
chip_gen: v5e
topology: v5e:2x2
jax: 0.10.0
libtpu: 0.0.40
codegen_flags: <defaults>
</compile_context>

<pallas_src>
import math
from functools import partial

import jax
import jax.numpy as jnp
import numpy as np
from jax.experimental import pallas as pl
from jax.experimental.pallas import tpu as pltpu

SEQ = 11          # module sequence length
SEQ_P = 16        # padded to a sublane multiple (8) inside the kernel
HID = 32
NHEAD = 4
DHEAD = 8
LN_EPS = 1e-5
NEG_MASK = -1e30  # large finite negative instead of -inf (NaN-safe)
BLOCK_B = 512     # batch elements per grid step; sweep 256/512/1024 per chip


def _multihead_kernel(q_ref, k_ref, v_ref, bias_ref, w_ref, b_ref, o_ref, *, mm_dtype):
    """One grid step: full MultiHead forward on a (bb, 11, 32) batch slab."""
    f32 = jnp.float32
    bb = q_ref.shape[0]
    M = bb * SEQ_P

    Qin = q_ref[...]                       # (bb, 11, 32) f32 -- also the residual
    Kin = k_ref[...]
    Vin = v_ref[...]

    w_all = w_ref[...]                     # (4, 32, 32) mm_dtype, pre-transposed (y = x @ W)
    bvec = b_ref[...]                      # (6, 32) f32: [bq*scale, bk, bv, bo, ln_w, ln_b]
    bq, bk, bv, bo = bvec[0:1], bvec[1:2], bvec[2:3], bvec[3:4]
    lnw, lnb = bvec[4:5], bvec[5:6]

    # Zero-pad the sequence dim 11 -> 16 so the (bb, 16, 32) <-> (bb*16, 32) reshapes
    # below are tile-aligned (no cross-tile repack); this lets every projection be a
    # single big 2-D MXU matmul instead of bb tiny batched ones.
    zpad = jnp.zeros((bb, SEQ_P - SEQ, HID), f32)
    Qp = jnp.concatenate([Qin, zpad], axis=1)          # (bb, 16, 32)
    Kp = jnp.concatenate([Kin, zpad], axis=1)
    Vp = jnp.concatenate([Vin, zpad], axis=1)

    # Projections: (bb*16, 32) x (32, 32), bf16 operands, f32 accumulation + f32 bias.
    # The 1/sqrt(8) attention scale is pre-folded into Wq / bq on the host.
    q2 = jnp.dot(Qp.reshape(M, HID).astype(mm_dtype), w_all[0],
                 preferred_element_type=f32) + bq
    k2 = jnp.dot(Kp.reshape(M, HID).astype(mm_dtype), w_all[1],
                 preferred_element_type=f32) + bk
    v2 = jnp.dot(Vp.reshape(M, HID).astype(mm_dtype), w_all[2],
                 preferred_element_type=f32) + bv
    q = q2.reshape(bb, SEQ_P, HID)
    k = k2.reshape(bb, SEQ_P, HID)
    v = v2.reshape(bb, SEQ_P, HID)

    # Shared additive mask bias (0 == keep, -1e30 == masked; pad keys masked).
    # Broadcast ONCE per grid step and reused by all four heads.
    neg_bias = jnp.broadcast_to(bias_ref[...][None], (bb, SEQ_P, SEQ_P))

    woT = w_all[3]                         # (32, 32) mm_dtype
    out2 = None                            # (bb*16, 32) f32 accumulator
    for h in range(NHEAD):
        lo = h * DHEAD
        qh = q[:, :, lo:lo + DHEAD].astype(mm_dtype)    # (bb, 16, 8)
        kh = k[:, :, lo:lo + DHEAD].astype(mm_dtype)
        vh = v[:, :, lo:lo + DHEAD].astype(mm_dtype)

        s = jnp.einsum('bqd,bkd->bqk', qh, kh,
                       preferred_element_type=f32)      # (bb, 16, 16)
        s = s + neg_bias                                 # masked_fill(-inf) equivalent
        s_max = jnp.max(s, axis=-1, keepdims=True)       # numerically-stable softmax
        e = jnp.exp(s - s_max)
        p = e * pl.reciprocal(jnp.sum(e, axis=-1, keepdims=True), approx=True)

        oh = jnp.einsum('bqk,bkd->bqd', p.astype(mm_dtype), vh,
                        preferred_element_type=f32)      # (bb, 16, 8)
        # Fold the head-concat into the output projection: head h only multiplies
        # rows [h*8:(h+1)*8] of Wo^T -- no lane-concat of head outputs is built.
        contrib = jnp.dot(oh.reshape(M, DHEAD).astype(mm_dtype),
                          woT[lo:lo + DHEAD, :], preferred_element_type=f32)
        out2 = contrib if out2 is None else out2 + contrib

    out2 = out2 + bo
    # TODO(synk): F.dropout(p=0.1) omitted (stochastic); inference/identity behaviour.

    # Residual + LayerNorm(32), on the flat (bb*16, 32) view.
    x = Qp.reshape(M, HID) + out2
    mu = jnp.mean(x, axis=-1, keepdims=True)
    var = jnp.mean((x - mu) ** 2, axis=-1, keepdims=True)
    y = (x - mu) * jax.lax.rsqrt(var + LN_EPS)
    y = y * lnw + lnb

    # Drop the pad rows and write back the (bb, 11, 32) block.
    o_ref[...] = y.reshape(bb, SEQ_P, HID)[:, :SEQ, :].astype(o_ref.dtype)


def multihead_forward(Q, K, V, mask, params, *, block_b=BLOCK_B,
                      matmul_dtype=jnp.bfloat16):
    """Q, K, V: (b, 11, 32) f32.  mask: (11, 11), nonzero == masked (masked_fill style)."""
    b = Q.shape[0]
    (wq, bq, wk, bk, wv, bv, wo, bo, lnw, lnb) = params

    inv_sqrt_d = 1.0 / math.sqrt(DHEAD)
    # Host-side packing: pre-transposed weights (no in-kernel .T), attention scale
    # folded into the Q projection, weights cast to the MXU operand dtype.
    w_stack = jnp.stack([wq.T * inv_sqrt_d, wk.T, wv.T, wo.T],
                        axis=0).astype(matmul_dtype)                 # (4, 32, 32)
    b_stack = jnp.concatenate([bq * inv_sqrt_d, bk, bv, bo, lnw, lnb],
                              axis=0).astype(jnp.float32)            # (6, 32)
    # (16, 16) additive mask bias: original (11, 11) region; pad keys/rows masked.
    mask_bias = jnp.pad((mask != 0).astype(jnp.float32),
                        ((0, SEQ_P - SEQ), (0, SEQ_P - SEQ)),
                        constant_values=1.0) * jnp.float32(NEG_MASK)

    bb = min(block_b, b)
    # v7x has two TensorCores: keep >= 2 grid steps when possible so the "parallel"
    # batch axis can be sharded across both.
    if b > 1 and pl.cdiv(b, bb) < 2:
        bb = pl.cdiv(b, 2)
    grid = (pl.cdiv(b, bb),)

    seq_spec = pl.BlockSpec((bb, SEQ, HID), lambda i: (i, 0, 0))
    bias_spec = pl.BlockSpec((SEQ_P, SEQ_P), lambda i: (0, 0))       # shared / resident
    w_spec = pl.BlockSpec((NHEAD, HID, HID), lambda i: (0, 0, 0))
    b_spec = pl.BlockSpec((6, HID), lambda i: (0, 0))

    kernel = partial(_multihead_kernel, mm_dtype=matmul_dtype)

    return pl.pallas_call(
        kernel,
        out_shape=jax.ShapeDtypeStruct((b, SEQ, HID), jnp.float32),
        grid_spec=pltpu.PrefetchScalarGridSpec(
            num_scalar_prefetch=0,
            grid=grid,
            in_specs=[seq_spec, seq_spec, seq_spec, bias_spec, w_spec, b_spec],
            out_specs=seq_spec,
        ),
        compiler_params=pltpu.CompilerParams(
            dimension_semantics=("parallel",),
            # <= 48 MiB keeps v7x (64 MiB physical VMEM) safe; plenty for bb=512-1024
            # now that no broadcast weights are materialized.
            vmem_limit_bytes=48 * 1024 * 1024,
        ),
    )(Q, K, V, mask_bias, w_stack, b_stack)


def _reference(Q, K, V, mask, params):
    """Pure-JAX reference mirroring the PyTorch forward (dropout = identity)."""
    (wq, bq, wk, bk, wv, bv, wo, bo, lnw, lnb) = params
    b = Q.shape[0]
    q = Q @ wq.T + bq
    k = K @ wk.T + bk
    v = V @ wv.T + bv
    q = q.reshape(b, SEQ, NHEAD, DHEAD).transpose(0, 2, 1, 3)
    k = k.reshape(b, SEQ, NHEAD, DHEAD).transpose(0, 2, 1, 3)
    v = v.reshape(b, SEQ, NHEAD, DHEAD).transpose(0, 2, 1, 3)
    s = jnp.einsum('bhqd,bhkd->bhqk', q, k) / math.sqrt(8.0)
    s = jnp.where(mask[None, None, :, :] > 0.0, -jnp.inf, s)
    p = jax.nn.softmax(s, axis=-1)
    o = jnp.einsum('bhqk,bhkd->bhqd', p, v)
    o = o.transpose(0, 2, 1, 3).reshape(b, SEQ, HID)
    o = o @ wo.T + bo
    x = Q + o
    mu = jnp.mean(x, axis=-1, keepdims=True)
    var = jnp.mean((x - mu) ** 2, axis=-1, keepdims=True)
    return (x - mu) / jnp.sqrt(var + LN_EPS) * lnw + lnb


def _init_params(key):
    ks = jax.random.split(key, 8)

    def lin(kw, kb):
        bound = 1.0 / math.sqrt(HID)
        w = jax.random.uniform(kw, (HID, HID), jnp.float32, -bound, bound)
        b = jax.random.uniform(kb, (1, HID), jnp.float32, -bound, bound)
        return w, b

    wq, bq = lin(ks[0], ks[1])
    wk, bk = lin(ks[2], ks[3])
    wv, bv = lin(ks[4], ks[5])
    wo, bo = lin(ks[6], ks[7])
    lnw = jnp.ones((1, HID), jnp.float32)    # LayerNorm default init
    lnb = jnp.zeros((1, HID), jnp.float32)
    return (wq, bq, wk, bk, wv, bv, wo, bo, lnw, lnb)


if __name__ == "__main__":
    key = jax.random.PRNGKey(0)
    kq, kk, kv, kp = jax.random.split(key, 4)

    B = 2
    Q = jax.random.normal(kq, (B, SEQ, HID), jnp.float32)
    K = jax.random.normal(kk, (B, SEQ, HID), jnp.float32)
    V = jax.random.normal(kv, (B, SEQ, HID), jnp.float32)
    # Causal mask (1.0 above the diagonal == masked), shared across batch & heads.
    causal = (jnp.arange(SEQ)[None, :] > jnp.arange(SEQ)[:, None]).astype(jnp.float32)

    params = _init_params(kp)
    ref = _reference(Q, K, V, causal, params)

    # Default (performance) path: bf16 MXU operands, f32 accumulation / softmax / LN.
    # Tolerance reflects bf16 operand rounding through two matmul layers + softmax.
    out = jax.block_until_ready(multihead_forward(Q, K, V, causal, params))
    np.testing.assert_allclose(np.asarray(out), np.asarray(ref), rtol=4e-2, atol=4e-2)

    # Strict structural check with f32 MXU operands (only remaining approximation is
    # the EUP approximate reciprocal in the softmax denominator).
    out_f32 = jax.block_until_ready(
        multihead_forward(Q, K, V, causal, params, matmul_dtype=jnp.float32))
    np.testing.assert_allclose(np.asarray(out_f32), np.asarray(ref), rtol=2e-3, atol=2e-3)

    print("KERNEL_OK")
</pallas_src>

<mosaic_0001>
module attributes {stable_mosaic.version = 11 : i64} {
  func.func @_multihead_kernel(%arg0: i32, %arg1: memref<1x11x32xf32, #tpu.memory_space<vmem>>, %arg2: memref<1x11x32xf32, #tpu.memory_space<vmem>>, %arg3: memref<1x11x32xf32, #tpu.memory_space<vmem>>, %arg4: memref<16x16xf32, #tpu.memory_space<vmem>>, %arg5: memref<4x32x32xbf16, #tpu.memory_space<vmem>>, %arg6: memref<6x32xf32, #tpu.memory_space<vmem>>, %arg7: memref<1x11x32xf32, #tpu.memory_space<vmem>>) attributes {dimension_semantics = [#tpu.dimension_semantics<parallel>], iteration_bounds = array<i64: 2>, scalar_prefetch = 0 : i64, scratch_operands = 0 : i64, tpu.core_type = #tpu.core_type<tc>, window_params = [{transform_indices = @transform_0, window_bounds = array<i64: 1, 11, 32>}, {transform_indices = @transform_1, window_bounds = array<i64: 1, 11, 32>}, {transform_indices = @transform_2, window_bounds = array<i64: 1, 11, 32>}, {pipeline_mode = #tpu.pipeline_mode<synchronous>, transform_indices = @transform_3, window_bounds = array<i64: 16, 16>}, {pipeline_mode = #tpu.pipeline_mode<synchronous>, transform_indices = @transform_4, window_bounds = array<i64: 4, 32, 32>}, {pipeline_mode = #tpu.pipeline_mode<synchronous>, transform_indices = @transform_5, window_bounds = array<i64: 6, 32>}, {transform_indices = @transform_6, window_bounds = array<i64: 1, 11, 32>}]} {
    %c0 = arith.constant 0 : index
    %c0_0 = arith.constant 0 : index
    %c0_1 = arith.constant 0 : index
    %0 = vector.load %arg1[%c0, %c0_0, %c0_1] : memref<1x11x32xf32, #tpu.memory_space<vmem>>, vector<1x11x32xf32>
    %c0_2 = arith.constant 0 : index
    %c0_3 = arith.constant 0 : index
    %c0_4 = arith.constant 0 : index
    %1 = vector.load %arg2[%c0_2, %c0_3, %c0_4] : memref<1x11x32xf32, #tpu.memory_space<vmem>>, vector<1x11x32xf32>
    %c0_5 = arith.constant 0 : index
    %c0_6 = arith.constant 0 : index
    %c0_7 = arith.constant 0 : index
    %2 = vector.load %arg3[%c0_5, %c0_6, %c0_7] : memref<1x11x32xf32, #tpu.memory_space<vmem>>, vector<1x11x32xf32>
    %c0_8 = arith.constant 0 : index
    %c0_9 = arith.constant 0 : index
    %c0_10 = arith.constant 0 : index
    %3 = vector.load %arg5[%c0_8, %c0_9, %c0_10] : memref<4x32x32xbf16, #tpu.memory_space<vmem>>, vector<4x32x32xbf16>
    %c0_11 = arith.constant 0 : index
    %c0_12 = arith.constant 0 : index
    %4 = vector.load %arg6[%c0_11, %c0_12] : memref<6x32xf32, #tpu.memory_space<vmem>>, vector<6x32xf32>
    %5 = vector.extract_strided_slice %4 {offsets = [0, 0], sizes = [1, 32], strides = [1, 1]} : vector<6x32xf32> to vector<1x32xf32>
    %6 = vector.extract_strided_slice %4 {offsets = [1, 0], sizes = [1, 32], strides = [1, 1]} : vector<6x32xf32> to vector<1x32xf32>
    %7 = vector.extract_strided_slice %4 {offsets = [2, 0], sizes = [1, 32], strides = [1, 1]} : vector<6x32xf32> to vector<1x32xf32>
    %8 = vector.extract_strided_slice %4 {offsets = [3, 0], sizes = [1, 32], strides = [1, 1]} : vector<6x32xf32> to vector<1x32xf32>
    %9 = vector.extract_strided_slice %4 {offsets = [4, 0], sizes = [1, 32], strides = [1, 1]} : vector<6x32xf32> to vector<1x32xf32>
    %10 = vector.extract_strided_slice %4 {offsets = [5, 0], sizes = [1, 32], strides = [1, 1]} : vector<6x32xf32> to vector<1x32xf32>
    %cst = arith.constant 0.000000e+00 : f32
    %11 = vector.broadcast %cst : f32 to vector<1x5x32xf32>
    %12 = tpu.concatenate %0, %11 in 1 : vector<1x11x32xf32>, vector<1x5x32xf32> -> vector<1x16x32xf32>
    %13 = tpu.concatenate %1, %11 in 1 : vector<1x11x32xf32>, vector<1x5x32xf32> -> vector<1x16x32xf32>
    %14 = tpu.concatenate %2, %11 in 1 : vector<1x11x32xf32>, vector<1x5x32xf32> -> vector<1x16x32xf32>
    %15 = vector.shape_cast %12 : vector<1x16x32xf32> to vector<16x32xf32>
    %16 = arith.truncf %15 : vector<16x32xf32> to vector<16x32xbf16>
    %17 = vector.extract_strided_slice %3 {offsets = [0, 0, 0], sizes = [1, 32, 32], strides = [1, 1, 1]} : vector<4x32x32xbf16> to vector<1x32x32xbf16>
    %18 = vector.shape_cast %17 : vector<1x32x32xbf16> to vector<32x32xbf16>
    %cst_13 = arith.constant dense<0.000000e+00> : vector<16x32xf32>
    %19 = tpu.matmul %16, %18, %cst_13 {dimension_numbers = #tpu.dot_dimension_numbers<[1], [0], [0], [1], [0, 0, 1, 1], [], []>} : vector<16x32xbf16>, vector<32x32xbf16>, vector<16x32xf32> -> vector<16x32xf32>
    %20 = vector.broadcast %5 : vector<1x32xf32> to vector<16x32xf32>
    %21 = arith.addf %19, %20 : vector<16x32xf32>
    %22 = vector.shape_cast %13 : vector<1x16x32xf32> to vector<16x32xf32>
    %23 = arith.truncf %22 : vector<16x32xf32> to vector<16x32xbf16>
    %24 = vector.extract_strided_slice %3 {offsets = [1, 0, 0], sizes = [1, 32, 32], strides = [1, 1, 1]} : vector<4x32x32xbf16> to vector<1x32x32xbf16>
    %25 = vector.shape_cast %24 : vector<1x32x32xbf16> to vector<32x32xbf16>
    %cst_14 = arith.constant dense<0.000000e+00> : vector<16x32xf32>
    %26 = tpu.matmul %23, %25, %cst_14 {dimension_numbers = #tpu.dot_dimension_numbers<[1], [0], [0], [1], [0, 0, 1, 1], [], []>} : vector<16x32xbf16>, vector<32x32xbf16>, vector<16x32xf32> -> vector<16x32xf32>
    %27 = vector.broadcast %6 : vector<1x32xf32> to vector<16x32xf32>
    %28 = arith.addf %26, %27 : vector<16x32xf32>
    %29 = vector.shape_cast %14 : vector<1x16x32xf32> to vector<16x32xf32>
    %30 = arith.truncf %29 : vector<16x32xf32> to vector<16x32xbf16>
    %31 = vector.extract_strided_slice %3 {offsets = [2, 0, 0], sizes = [1, 32, 32], strides = [1, 1, 1]} : vector<4x32x32xbf16> to vector<1x32x32xbf16>
    %32 = vector.shape_cast %31 : vector<1x32x32xbf16> to vector<32x32xbf16>
    %cst_15 = arith.constant dense<0.000000e+00> : vector<16x32xf32>
    %33 = tpu.matmul %30, %32, %cst_15 {dimension_numbers = #tpu.dot_dimension_numbers<[1], [0], [0], [1], [0, 0, 1, 1], [], []>} : vector<16x32xbf16>, vector<32x32xbf16>, vector<16x32xf32> -> vector<16x32xf32>
    %34 = vector.broadcast %7 : vector<1x32xf32> to vector<16x32xf32>
    %35 = arith.addf %33, %34 : vector<16x32xf32>
    %36 = vector.shape_cast %21 : vector<16x32xf32> to vector<1x16x32xf32>
    %37 = vector.shape_cast %28 : vector<16x32xf32> to vector<1x16x32xf32>
    %38 = vector.shape_cast %35 : vector<16x32xf32> to vector<1x16x32xf32>
    %c0_16 = arith.constant 0 : index
    %c0_17 = arith.constant 0 : index
    %39 = vector.load %arg4[%c0_16, %c0_17] : memref<16x16xf32, #tpu.memory_space<vmem>>, vector<16x16xf32>
    %40 = vector.shape_cast %39 : vector<16x16xf32> to vector<1x16x16xf32>
    %41 = vector.extract_strided_slice %3 {offsets = [3, 0, 0], sizes = [1, 32, 32], strides = [1, 1, 1]} : vector<4x32x32xbf16> to vector<1x32x32xbf16>
    %42 = vector.shape_cast %41 : vector<1x32x32xbf16> to vector<32x32xbf16>
    %43 = vector.extract_strided_slice %36 {offsets = [0, 0, 0], sizes = [1, 16, 8], strides = [1, 1, 1]} : vector<1x16x32xf32> to vector<1x16x8xf32>
    %44 = arith.truncf %43 : vector<1x16x8xf32> to vector<1x16x8xbf16>
    %45 = vector.extract_strided_slice %37 {offsets = [0, 0, 0], sizes = [1, 16, 8], strides = [1, 1, 1]} : vector<1x16x32xf32> to vector<1x16x8xf32>
    %46 = arith.truncf %45 : vector<1x16x8xf32> to vector<1x16x8xbf16>
    %47 = vector.extract_strided_slice %38 {offsets = [0, 0, 0], sizes = [1, 16, 8], strides = [1, 1, 1]} : vector<1x16x32xf32> to vector<1x16x8xf32>
    %48 = arith.truncf %47 : vector<1x16x8xf32> to vector<1x16x8xbf16>
    "tpu.trace_start"() <{level = 10 : i32, message = "bqd,bkd->bqk"}> : () -> ()
    %cst_18 = arith.constant dense<0.000000e+00> : vector<1x16x16xf32>
    %49 = tpu.matmul %44, %46, %cst_18 {dimension_numbers = #tpu.dot_dimension_numbers<[2], [2], [1], [1], [0, 0, 0, 1, 1, 1], [0], [0]>} : vector<1x16x8xbf16>, vector<1x16x8xbf16>, vector<1x16x16xf32> -> vector<1x16x16xf32>
    "tpu.trace_stop"() : () -> ()
    %50 = arith.addf %49, %40 : vector<1x16x16xf32>
    %cst_19 = arith.constant dense<0xFF800000> : vector<1x16xf32>
    %51 = vector.multi_reduction <maximumf>, %50, %cst_19 [2] : vector<1x16x16xf32> to vector<1x16xf32>
    %52 = vector.shape_cast %51 : vector<1x16xf32> to vector<1x16x1xf32>
    %53 = vector.broadcast %52 : vector<1x16x1xf32> to vector<1x16x16xf32>
    %54 = arith.subf %50, %53 : vector<1x16x16xf32>
    %55 = math.exp %54 : vector<1x16x16xf32>
    %cst_20 = arith.constant dense<0.000000e+00> : vector<1x16xf32>
    %56 = vector.multi_reduction <add>, %55, %cst_20 [2] : vector<1x16x16xf32> to vector<1x16xf32>
    %57 = vector.shape_cast %56 : vector<1x16xf32> to vector<1x16x1xf32>
    %58 = tpu.reciprocal %57 {approx = true} : vector<1x16x1xf32> -> vector<1x16x1xf32>
    %59 = vector.broadcast %58 : vector<1x16x1xf32> to vector<1x16x16xf32>
    %60 = arith.mulf %55, %59 : vector<1x16x16xf32>
    %61 = arith.truncf %60 : vector<1x16x16xf32> to vector<1x16x16xbf16>
    "tpu.trace_start"() <{level = 10 : i32, message = "bqk,bkd->bqd"}> : () -> ()
    %cst_21 = arith.constant dense<0.000000e+00> : vector<1x16x8xf32>
    %62 = tpu.matmul %61, %48, %cst_21 {dimension_numbers = #tpu.dot_dimension_numbers<[2], [1], [1], [2], [0, 0, 0, 1, 1, 2], [0], [0]>} : vector<1x16x16xbf16>, vector<1x16x8xbf16>, vector<1x16x8xf32> -> vector<1x16x8xf32>
    "tpu.trace_stop"() : () -> ()
    %63 = vector.shape_cast %62 : vector<1x16x8xf32> to vector<16x8xf32>
    %64 = arith.truncf %63 : vector<16x8xf32> to vector<16x8xbf16>
    %65 = vector.extract_strided_slice %42 {offsets = [0, 0], sizes = [8, 32], strides = [1, 1]} : vector<32x32xbf16> to vector<8x32xbf16>
    %cst_22 = arith.constant dense<0.000000e+00> : vector<16x32xf32>
    %66 = tpu.matmul %64, %65, %cst_22 {dimension_numbers = #tpu.dot_dimension_numbers<[1], [0], [0], [1], [0, 0, 1, 1], [], []>} : vector<16x8xbf16>, vector<8x32xbf16>, vector<16x32xf32> -> vector<16x32xf32>
    %67 = vector.extract_strided_slice %36 {offsets = [0, 0, 8], sizes = [1, 16, 8], strides = [1, 1, 1]} : vector<1x16x32xf32> to vector<1x16x8xf32>
    %68 = arith.truncf %67 : vector<1x16x8xf32> to vector<1x16x8xbf16>
    %69 = vector.extract_strided_slice %37 {offsets = [0, 0, 8], sizes = [1, 16, 8], strides = [1, 1, 1]} : vector<1x16x32xf32> to vector<1x16x8xf32>
    %70 = arith.truncf %69 : vector<1x16x8xf32> to vector<1x16x8xbf16>
    %71 = vector.extract_strided_slice %38 {offsets = [0, 0, 8], sizes = [1, 16, 8], strides = [1, 1, 1]} : vector<1x16x32xf32> to vector<1x16x8xf32>
    %72 = arith.truncf %71 : vector<1x16x8xf32> to vector<1x16x8xbf16>
    "tpu.trace_start"() <{level = 10 : i32, message = "bqd,bkd->bqk"}> : () -> ()
    %cst_23 = arith.constant dense<0.000000e+00> : vector<1x16x16xf32>
    %73 = tpu.matmul %68, %70, %cst_23 {dimension_numbers = #tpu.dot_dimension_numbers<[2], [2], [1], [1], [0, 0, 0, 1, 1, 1], [0], [0]>} : vector<1x16x8xbf16>, vector<1x16x8xbf16>, vector<1x16x16xf32> -> vector<1x16x16xf32>
    "tpu.trace_stop"() : () -> ()
    %74 = arith.addf %73, %40 : vector<1x16x16xf32>
    %cst_24 = arith.constant dense<0xFF800000> : vector<1x16xf32>
    %75 = vector.multi_reduction <maximumf>, %74, %cst_24 [2] : vector<1x16x16xf32> to vector<1x16xf32>
    %76 = vector.shape_cast %75 : vector<1x16xf32> to vector<1x16x1xf32>
    %77 = vector.broadcast %76 : vector<1x16x1xf32> to vector<1x16x16xf32>
    %78 = arith.subf %74, %77 : vector<1x16x16xf32>
    %79 = math.exp %78 : vector<1x16x16xf32>
    %cst_25 = arith.constant dense<0.000000e+00> : vector<1x16xf32>
    %80 = vector.multi_reduction <add>, %79, %cst_25 [2] : vector<1x16x16xf32> to vector<1x16xf32>
    %81 = vector.shape_cast %80 : vector<1x16xf32> to vector<1x16x1xf32>
    %82 = tpu.reciprocal %81 {approx = true} : vector<1x16x1xf32> -> vector<1x16x1xf32>
    %83 = vector.broadcast %82 : vector<1x16x1xf32> to vector<1x16x16xf32>
    %84 = arith.mulf %79, %83 : vector<1x16x16xf32>
    %85 = arith.truncf %84 : vector<1x16x16xf32> to vector<1x16x16xbf16>
    "tpu.trace_start"() <{level = 10 : i32, message = "bqk,bkd->bqd"}> : () -> ()
    %cst_26 = arith.constant dense<0.000000e+00> : vector<1x16x8xf32>
    %86 = tpu.matmul %85, %72, %cst_26 {dimension_numbers = #tpu.dot_dimension_numbers<[2], [1], [1], [2], [0, 0, 0, 1, 1, 2], [0], [0]>} : vector<1x16x16xbf16>, vector<1x16x8xbf16>, vector<1x16x8xf32> -> vector<1x16x8xf32>
    "tpu.trace_stop"() : () -> ()
    %87 = vector.shape_cast %86 : vector<1x16x8xf32> to vector<16x8xf32>
    %88 = arith.truncf %87 : vector<16x8xf32> to vector<16x8xbf16>
    %89 = vector.extract_strided_slice %42 {offsets = [8, 0], sizes = [8, 32], strides = [1, 1]} : vector<32x32xbf16> to vector<8x32xbf16>
    %cst_27 = arith.constant dense<0.000000e+00> : vector<16x32xf32>
    %90 = tpu.matmul %88, %89, %cst_27 {dimension_numbers = #tpu.dot_dimension_numbers<[1], [0], [0], [1], [0, 0, 1, 1], [], []>} : vector<16x8xbf16>, vector<8x32xbf16>, vector<16x32xf32> -> vector<16x32xf32>
    %91 = arith.addf %66, %90 : vector<16x32xf32>
    %92 = vector.extract_strided_slice %36 {offsets = [0, 0, 16], sizes = [1, 16, 8], strides = [1, 1, 1]} : vector<1x16x32xf32> to vector<1x16x8xf32>
    %93 = arith.truncf %92 : vector<1x16x8xf32> to vector<1x16x8xbf16>
    %94 = vector.extract_strided_slice %37 {offsets = [0, 0, 16], sizes = [1, 16, 8], strides = [1, 1, 1]} : vector<1x16x32xf32> to vector<1x16x8xf32>
    %95 = arith.truncf %94 : vector<1x16x8xf32> to vector<1x16x8xbf16>
    %96 = vector.extract_strided_slice %38 {offsets = [0, 0, 16], sizes = [1, 16, 8], strides = [1, 1, 1]} : vector<1x16x32xf32> to vector<1x16x8xf32>
    %97 = arith.truncf %96 : vector<1x16x8xf32> to vector<1x16x8xbf16>
    "tpu.trace_start"() <{level = 10 : i32, message = "bqd,bkd->bqk"}> : () -> ()
    %cst_28 = arith.constant dense<0.000000e+00> : vector<1x16x16xf32>
    %98 = tpu.matmul %93, %95, %cst_28 {dimension_numbers = #tpu.dot_dimension_numbers<[2], [2], [1], [1], [0, 0, 0, 1, 1, 1], [0], [0]>} : vector<1x16x8xbf16>, vector<1x16x8xbf16>, vector<1x16x16xf32> -> vector<1x16x16xf32>
    "tpu.trace_stop"() : () -> ()
    %99 = arith.addf %98, %40 : vector<1x16x16xf32>
    %cst_29 = arith.constant dense<0xFF800000> : vector<1x16xf32>
    %100 = vector.multi_reduction <maximumf>, %99, %cst_29 [2] : vector<1x16x16xf32> to vector<1x16xf32>
    %101 = vector.shape_cast %100 : vector<1x16xf32> to vector<1x16x1xf32>
    %102 = vector.broadcast %101 : vector<1x16x1xf32> to vector<1x16x16xf32>
    %103 = arith.subf %99, %102 : vector<1x16x16xf32>
    %104 = math.exp %103 : vector<1x16x16xf32>
    %cst_30 = arith.constant dense<0.000000e+00> : vector<1x16xf32>
    %105 = vector.multi_reduction <add>, %104, %cst_30 [2] : vector<1x16x16xf32> to vector<1x16xf32>
    %106 = vector.shape_cast %105 : vector<1x16xf32> to vector<1x16x1xf32>
    %107 = tpu.reciprocal %106 {approx = true} : vector<1x16x1xf32> -> vector<1x16x1xf32>
    %108 = vector.broadcast %107 : vector<1x16x1xf32> to vector<1x16x16xf32>
    %109 = arith.mulf %104, %108 : vector<1x16x16xf32>
    %110 = arith.truncf %109 : vector<1x16x16xf32> to vector<1x16x16xbf16>
    "tpu.trace_start"() <{level = 10 : i32, message = "bqk,bkd->bqd"}> : () -> ()
    %cst_31 = arith.constant dense<0.000000e+00> : vector<1x16x8xf32>
    %111 = tpu.matmul %110, %97, %cst_31 {dimension_numbers = #tpu.dot_dimension_numbers<[2], [1], [1], [2], [0, 0, 0, 1, 1, 2], [0], [0]>} : vector<1x16x16xbf16>, vector<1x16x8xbf16>, vector<1x16x8xf32> -> vector<1x16x8xf32>
    "tpu.trace_stop"() : () -> ()
    %112 = vector.shape_cast %111 : vector<1x16x8xf32> to vector<16x8xf32>
    %113 = arith.truncf %112 : vector<16x8xf32> to vector<16x8xbf16>
    %114 = vector.extract_strided_slice %42 {offsets = [16, 0], sizes = [8, 32], strides = [1, 1]} : vector<32x32xbf16> to vector<8x32xbf16>
    %cst_32 = arith.constant dense<0.000000e+00> : vector<16x32xf32>
    %115 = tpu.matmul %113, %114, %cst_32 {dimension_numbers = #tpu.dot_dimension_numbers<[1], [0], [0], [1], [0, 0, 1, 1], [], []>} : vector<16x8xbf16>, vector<8x32xbf16>, vector<16x32xf32> -> vector<16x32xf32>
    %116 = arith.addf %91, %115 : vector<16x32xf32>
    %117 = vector.extract_strided_slice %36 {offsets = [0, 0, 24], sizes = [1, 16, 8], strides = [1, 1, 1]} : vector<1x16x32xf32> to vector<1x16x8xf32>
    %118 = arith.truncf %117 : vector<1x16x8xf32> to vector<1x16x8xbf16>
    %119 = vector.extract_strided_slice %37 {offsets = [0, 0, 24], sizes = [1, 16, 8], strides = [1, 1, 1]} : vector<1x16x32xf32> to vector<1x16x8xf32>
    %120 = arith.truncf %119 : vector<1x16x8xf32> to vector<1x16x8xbf16>
    %121 = vector.extract_strided_slice %38 {offsets = [0, 0, 24], sizes = [1, 16, 8], strides = [1, 1, 1]} : vector<1x16x32xf32> to vector<1x16x8xf32>
    %122 = arith.truncf %121 : vector<1x16x8xf32> to vector<1x16x8xbf16>
    "tpu.trace_start"() <{level = 10 : i32, message = "bqd,bkd->bqk"}> : () -> ()
    %cst_33 = arith.constant dense<0.000000e+00> : vector<1x16x16xf32>
    %123 = tpu.matmul %118, %120, %cst_33 {dimension_numbers = #tpu.dot_dimension_numbers<[2], [2], [1], [1], [0, 0, 0, 1, 1, 1], [0], [0]>} : vector<1x16x8xbf16>, vector<1x16x8xbf16>, vector<1x16x16xf32> -> vector<1x16x16xf32>
    "tpu.trace_stop"() : () -> ()
    %124 = arith.addf %123, %40 : vector<1x16x16xf32>
    %cst_34 = arith.constant dense<0xFF800000> : vector<1x16xf32>
    %125 = vector.multi_reduction <maximumf>, %124, %cst_34 [2] : vector<1x16x16xf32> to vector<1x16xf32>
    %126 = vector.shape_cast %125 : vector<1x16xf32> to vector<1x16x1xf32>
    %127 = vector.broadcast %126 : vector<1x16x1xf32> to vector<1x16x16xf32>
    %128 = arith.subf %124, %127 : vector<1x16x16xf32>
    %129 = math.exp %128 : vector<1x16x16xf32>
    %cst_35 = arith.constant dense<0.000000e+00> : vector<1x16xf32>
    %130 = vector.multi_reduction <add>, %129, %cst_35 [2] : vector<1x16x16xf32> to vector<1x16xf32>
    %131 = vector.shape_cast %130 : vector<1x16xf32> to vector<1x16x1xf32>
    %132 = tpu.reciprocal %131 {approx = true} : vector<1x16x1xf32> -> vector<1x16x1xf32>
    %133 = vector.broadcast %132 : vector<1x16x1xf32> to vector<1x16x16xf32>
    %134 = arith.mulf %129, %133 : vector<1x16x16xf32>
    %135 = arith.truncf %134 : vector<1x16x16xf32> to vector<1x16x16xbf16>
    "tpu.trace_start"() <{level = 10 : i32, message = "bqk,bkd->bqd"}> : () -> ()
    %cst_36 = arith.constant dense<0.000000e+00> : vector<1x16x8xf32>
    %136 = tpu.matmul %135, %122, %cst_36 {dimension_numbers = #tpu.dot_dimension_numbers<[2], [1], [1], [2], [0, 0, 0, 1, 1, 2], [0], [0]>} : vector<1x16x16xbf16>, vector<1x16x8xbf16>, vector<1x16x8xf32> -> vector<1x16x8xf32>
    "tpu.trace_stop"() : () -> ()
    %137 = vector.shape_cast %136 : vector<1x16x8xf32> to vector<16x8xf32>
    %138 = arith.truncf %137 : vector<16x8xf32> to vector<16x8xbf16>
    %139 = vector.extract_strided_slice %42 {offsets = [24, 0], sizes = [8, 32], strides = [1, 1]} : vector<32x32xbf16> to vector<8x32xbf16>
    %cst_37 = arith.constant dense<0.000000e+00> : vector<16x32xf32>
    %140 = tpu.matmul %138, %139, %cst_37 {dimension_numbers = #tpu.dot_dimension_numbers<[1], [0], [0], [1], [0, 0, 1, 1], [], []>} : vector<16x8xbf16>, vector<8x32xbf16>, vector<16x32xf32> -> vector<16x32xf32>
    %141 = arith.addf %116, %140 : vector<16x32xf32>
    %142 = vector.broadcast %8 : vector<1x32xf32> to vector<16x32xf32>
    %143 = arith.addf %141, %142 : vector<16x32xf32>
    %144 = vector.shape_cast %12 : vector<1x16x32xf32> to vector<16x32xf32>
    %145 = arith.addf %144, %143 : vector<16x32xf32>
    %cst_38 = arith.constant dense<0.000000e+00> : vector<16xf32>
    %146 = vector.multi_reduction <add>, %145, %cst_38 [1] : vector<16x32xf32> to vector<16xf32>
    %147 = vector.shape_cast %146 : vector<16xf32> to vector<16x1xf32>
    %cst_39 = arith.constant 3.200000e+01 : f32
    %148 = vector.broadcast %cst_39 : f32 to vector<16x1xf32>
    %149 = arith.divf %147, %148 : vector<16x1xf32>
    %150 = vector.broadcast %149 : vector<16x1xf32> to vector<16x32xf32>
    %151 = arith.subf %145, %150 : vector<16x32xf32>
    %152 = arith.mulf %151, %151 : vector<16x32xf32>
    %cst_40 = arith.constant dense<0.000000e+00> : vector<16xf32>
    %153 = vector.multi_reduction <add>, %152, %cst_40 [1] : vector<16x32xf32> to vector<16xf32>
    %154 = vector.shape_cast %153 : vector<16xf32> to vector<16x1xf32>
    %cst_41 = arith.constant 3.200000e+01 : f32
    %155 = vector.broadcast %cst_41 : f32 to vector<16x1xf32>
    %156 = arith.divf %154, %155 : vector<16x1xf32>
    %157 = vector.broadcast %149 : vector<16x1xf32> to vector<16x32xf32>
    %158 = arith.subf %145, %157 : vector<16x32xf32>
    %cst_42 = arith.constant 9.99999974E-6 : f32
    %159 = vector.broadcast %cst_42 : f32 to vector<16x1xf32>
    %160 = arith.addf %156, %159 : vector<16x1xf32>
    %161 = math.rsqrt %160 : vector<16x1xf32>
    %162 = vector.broadcast %161 : vector<16x1xf32> to vector<16x32xf32>
    %163 = arith.mulf %158, %162 : vector<16x32xf32>
    %164 = vector.broadcast %9 : vector<1x32xf32> to vector<16x32xf32>
    %165 = arith.mulf %163, %164 : vector<16x32xf32>
    %166 = vector.broadcast %10 : vector<1x32xf32> to vector<16x32xf32>
    %167 = arith.addf %165, %166 : vector<16x32xf32>
    %168 = vector.shape_cast %167 : vector<16x32xf32> to vector<1x16x32xf32>
    %169 = vector.extract_strided_slice %168 {offsets = [0, 0, 0], sizes = [1, 11, 32], strides = [1, 1, 1]} : vector<1x16x32xf32> to vector<1x11x32xf32>
    %c0_43 = arith.constant 0 : index
    %c0_44 = arith.constant 0 : index
    %c0_45 = arith.constant 0 : index
    %170 = vector.load %arg7[%c0_43, %c0_44, %c0_45] : memref<1x11x32xf32, #tpu.memory_space<vmem>>, vector<1x11x32xf32>
    tpu.vector_store %arg7[%c0_43, %c0_44, %c0_45], %169 {strides = array<i32>} : memref<1x11x32xf32, #tpu.memory_space<vmem>>, vector<1x11x32xf32>,
    return
  }
  func.func @transform_0(%arg0: i32) -> (i32, i32, i32) {
    %c0_i32 = arith.constant 0 : i32
    %c0_i32_0 = arith.constant 0 : i32
    %c0_i32_1 = arith.constant 0 : i32
    return %arg0, %c0_i32, %c0_i32_0 : i32, i32, i32
  }
  func.func @transform_1(%arg0: i32) -> (i32, i32, i32) {
    %c0_i32 = arith.constant 0 : i32
    %c0_i32_0 = arith.constant 0 : i32
    %c0_i32_1 = arith.constant 0 : i32
    return %arg0, %c0_i32, %c0_i32_0 : i32, i32, i32
  }
  func.func @transform_2(%arg0: i32) -> (i32, i32, i32) {
    %c0_i32 = arith.constant 0 : i32
    %c0_i32_0 = arith.constant 0 : i32
    %c0_i32_1 = arith.constant 0 : i32
    return %arg0, %c0_i32, %c0_i32_0 : i32, i32, i32
  }
  func.func @transform_3(%arg0: i32) -> (i32, i32) {
    %c0_i32 = arith.constant 0 : i32
    %c0_i32_0 = arith.constant 0 : i32
    %c0_i32_1 = arith.constant 0 : i32
    return %c0_i32, %c0_i32_0 : i32, i32
  }
  func.func @transform_4(%arg0: i32) -> (i32, i32, i32) {
    %c0_i32 = arith.constant 0 : i32
    %c0_i32_0 = arith.constant 0 : i32
    %c0_i32_1 = arith.constant 0 : i32
    %c0_i32_2 = arith.constant 0 : i32
    return %c0_i32, %c0_i32_0, %c0_i32_1 : i32, i32, i32
  }
  func.func @transform_5(%arg0: i32) -> (i32, i32) {
    %c0_i32 = arith.constant 0 : i32
    %c0_i32_0 = arith.constant 0 : i32
    %c0_i32_1 = arith.constant 0 : i32
    return %c0_i32, %c0_i32_0 : i32, i32
  }
  func.func @transform_6(%arg0: i32) -> (i32, i32, i32) {
    %c0_i32 = arith.constant 0 : i32
    %c0_i32_0 = arith.constant 0 : i32
    %c0_i32_1 = arith.constant 0 : i32
    return %arg0, %c0_i32, %c0_i32_0 : i32, i32, i32
  }
}

</mosaic_0001>

<llo_original>
// kernel: tpu_custom_call.1
$region0: #{tpu_custom_call.1}
  #allocation0 [shape = 'u32[]', space=smem, size = 0x4, offset = 0x4, fixed_abs, tag = 'smem constant byte address 0x4 - core index']
  #allocation1 [shape = 'u32[72,128]{1,0:T(1,128)}', space=vmem, size = 0x9000, scoped, tag = 'internal scratch']
  %s0 = inlined_call_operand.vmem [shape: f32[2,11,32], index: 0, kind: input, shape index: {}]
  %s1 = inlined_call_operand.vmem [shape: f32[2,11,32], index: 1, kind: input, shape index: {}]
  %s2 = inlined_call_operand.vmem [shape: f32[2,11,32], index: 2, kind: input, shape index: {}]
  %s3 = inlined_call_operand.vmem [shape: f32[16,16], index: 3, kind: input, shape index: {}]
  %s4 = inlined_call_operand.vmem [shape: bf16[4,32,32], index: 4, kind: input, shape index: {}]
  %s5 = inlined_call_operand.vmem [shape: f32[6,32], index: 5, kind: input, shape index: {}]
  %s6 = inlined_call_operand.vmem [shape: f32[2,11,32], index: 6, kind: output, shape index: {}]
  %s7 = sld [smem:[#allocation0]]
  $region57: #{tpu_custom_call.1} parent=0
    _
  %s9 = ssub.s32 1, %s7
  %s10 = scalar_select 0, %s9, %s7
  loop: start=0, step=1, limit=4
  $region2: #{tpu_custom_call.1} parent=0 // loop_pre_header
    _
  $region3: #{tpu_custom_call.1} parent=0 // loop_header
    %s12 = sphi 0, %s16
    %p13 = scmp.ge.s32.totalorder %s12, 4
    %s22 = sphi 0, %s24
    %s25 = sphi 0, %s22
    %s26 = sphi 0, %s25
    %s42 = sphi 0, %s26
    %s48 = sphi 0, %s50
    %s51 = sphi 0, %s48
    %s52 = sphi 0, %s51
    %s68 = sphi 0, %s52
    %s74 = sphi 0, %s76
    %s77 = sphi 0, %s74
    %s78 = sphi 0, %s77
    %s94 = sphi 0, %s78
    %s98 = sphi 0, %s98
    %s100 = sphi 0, %s98
    %s101 = sphi 0, %s100
    %s115 = sphi 0, %s101
    %s119 = sphi 0, %s119
    %s121 = sphi 0, %s119
    %s122 = sphi 0, %s121
    %s136 = sphi 0, %s122
    %s140 = sphi 0, %s140
    %s142 = sphi 0, %s140
    %s143 = sphi 0, %s142
    %s157 = sphi 0, %s143
    %s163 = sphi 0, %s165
    %s166 = sphi 0, %s163
    %s167 = sphi 0, %s166
    %s183 = sphi 0, %s167
  $region4: #{tpu_custom_call.1} parent=0 // loop_header_branch
    %15 = sbr.rel (%p13) target = $region8
  $region5: #{tpu_custom_call.1} parent=0 // loop_body
    %s17 = ssub.s32 %s12, 1
    %s18 = ssub.s32 %s12, 2
    %s19 = sadd.s32 %s12, 1
    %s20 = ssub.s32 %s12, %s19
    %p21 = scmp.eq.s32.totalorder %s20, 0
    %s23 = sadd.s32 %s22, 1
    %s24 = scalar_select %p21, %s22, %s23
    %p27 = pneg %p21
    %p28 = scmp.eq.s32.totalorder %s12, 1
    %p29 = por %p27, %p28
    %p30 = scmp.ne.s32.totalorder %s22, %s25
    %p31 = scmp.eq.s32.totalorder %s12, 0
    %p32 = por %p30, %p31
    %p33 = scmp.ne.s32.totalorder %s22, %s25
    %p34 = scmp.eq.s32.totalorder %s17, 1
    %p35 = por %p33, %p34
    %p36 = scmp.ne.s32.totalorder %s25, %s26
    %p37 = scmp.eq.s32.totalorder %s17, 0
    %p38 = por %p36, %p37
    %p39 = scmp.ne.s32.totalorder %s25, %s26
    %p40 = scmp.eq.s32.totalorder %s18, 1
    %p41 = por %p39, %p40
    %p43 = scmp.ne.s32.totalorder %s26, %s42
    %p44 = scmp.eq.s32.totalorder %s18, 0
    %p45 = por %p43, %p44
    %s46 = ssub.s32 %s12, %s19
    %p47 = scmp.eq.s32.totalorder %s46, 0
    %s49 = sadd.s32 %s48, 1
    %s50 = scalar_select %p47, %s48, %s49
    %p53 = pneg %p47
    %p54 = scmp.eq.s32.totalorder %s12, 1
    %p55 = por %p53, %p54
    %p56 = scmp.ne.s32.totalorder %s48, %s51
    %p57 = scmp.eq.s32.totalorder %s12, 0
    %p58 = por %p56, %p57
    %p59 = scmp.ne.s32.totalorder %s48, %s51
    %p60 = scmp.eq.s32.totalorder %s17, 1
    %p61 = por %p59, %p60
    %p62 = scmp.ne.s32.totalorder %s51, %s52
    %p63 = scmp.eq.s32.totalorder %s17, 0
    %p64 = por %p62, %p63
    %p65 = scmp.ne.s32.totalorder %s51, %s52
    %p66 = scmp.eq.s32.totalorder %s18, 1
    %p67 = por %p65, %p66
    %p69 = scmp.ne.s32.totalorder %s52, %s68
    %p70 = scmp.eq.s32.totalorder %s18, 0
    %p71 = por %p69, %p70
    %s72 = ssub.s32 %s12, %s19
    %p73 = scmp.eq.s32.totalorder %s72, 0
    %s75 = sadd.s32 %s74, 1
    %s76 = scalar_select %p73, %s74, %s75
    %p79 = pneg %p73
    %p80 = scmp.eq.s32.totalorder %s12, 1
    %p81 = por %p79, %p80
    %p82 = scmp.ne.s32.totalorder %s74, %s77
    %p83 = scmp.eq.s32.totalorder %s12, 0
    %p84 = por %p82, %p83
    %p85 = scmp.ne.s32.totalorder %s74, %s77
    %p86 = scmp.eq.s32.totalorder %s17, 1
    %p87 = por %p85, %p86
    %p88 = scmp.ne.s32.totalorder %s77, %s78
    %p89 = scmp.eq.s32.totalorder %s17, 0
    %p90 = por %p88, %p89
    %p91 = scmp.ne.s32.totalorder %s77, %s78
    %p92 = scmp.eq.s32.totalorder %s18, 1
    %p93 = por %p91, %p92
    %p95 = scmp.ne.s32.totalorder %s78, %s94
    %p96 = scmp.eq.s32.totalorder %s18, 0
    %p97 = por %p95, %p96
    %s99 = sadd.s32 %s98, 1
    %p102 = scmp.eq.s32.totalorder %s12, 1
    %p103 = scmp.ne.s32.totalorder %s98, %s100
    %p104 = scmp.eq.s32.totalorder %s12, 0
    %p105 = por %p103, %p104
    %p106 = scmp.ne.s32.totalorder %s98, %s100
    %p107 = scmp.eq.s32.totalorder %s17, 1
    %p108 = por %p106, %p107
    %p109 = scmp.ne.s32.totalorder %s100, %s101
    %p110 = scmp.eq.s32.totalorder %s17, 0
    %p111 = por %p109, %p110
    %p112 = scmp.ne.s32.totalorder %s100, %s101
    %p113 = scmp.eq.s32.totalorder %s18, 1
    %p114 = por %p112, %p113
    %p116 = scmp.ne.s32.totalorder %s101, %s115
    %p117 = scmp.eq.s32.totalorder %s18, 0
    %p118 = por %p116, %p117
    %s120 = sadd.s32 %s119, 1
    %p123 = scmp.eq.s32.totalorder %s12, 1
    %p124 = scmp.ne.s32.totalorder %s119, %s121
    %p125 = scmp.eq.s32.totalorder %s12, 0
    %p126 = por %p124, %p125
    %p127 = scmp.ne.s32.totalorder %s119, %s121
    %p128 = scmp.eq.s32.totalorder %s17, 1
    %p129 = por %p127, %p128
    %p130 = scmp.ne.s32.totalorder %s121, %s122
    %p131 = scmp.eq.s32.totalorder %s17, 0
    %p132 = por %p130, %p131
    %p133 = scmp.ne.s32.totalorder %s121, %s122
    %p134 = scmp.eq.s32.totalorder %s18, 1
    %p135 = por %p133, %p134
    %p137 = scmp.ne.s32.totalorder %s122, %s136
    %p138 = scmp.eq.s32.totalorder %s18, 0
    %p139 = por %p137, %p138
    %s141 = sadd.s32 %s140, 1
    %p144 = scmp.eq.s32.totalorder %s12, 1
    %p145 = scmp.ne.s32.totalorder %s140, %s142
    %p146 = scmp.eq.s32.totalorder %s12, 0
    %p147 = por %p145, %p146
    %p148 = scmp.ne.s32.totalorder %s140, %s142
    %p149 = scmp.eq.s32.totalorder %s17, 1
    %p150 = por %p148, %p149
    %p151 = scmp.ne.s32.totalorder %s142, %s143
    %p152 = scmp.eq.s32.totalorder %s17, 0
    %p153 = por %p151, %p152
    %p154 = scmp.ne.s32.totalorder %s142, %s143
    %p155 = scmp.eq.s32.totalorder %s18, 1
    %p156 = por %p154, %p155
    %p158 = scmp.ne.s32.totalorder %s143, %s157
    %p159 = scmp.eq.s32.totalorder %s18, 0
    %p160 = por %p158, %p159
    %s161 = ssub.s32 %s12, %s19
    %p162 = scmp.eq.s32.totalorder %s161, 0
    %s164 = sadd.s32 %s163, 1
    %s165 = scalar_select %p162, %s163, %s164
    %p168 = pneg %p162
    %p169 = scmp.eq.s32.totalorder %s12, 1
    %p170 = por %p168, %p169
    %p171 = scmp.ne.s32.totalorder %s163, %s166
    %p172 = scmp.eq.s32.totalorder %s12, 0
    %p173 = por %p171, %p172
    %p174 = scmp.ne.s32.totalorder %s163, %s166
    %p175 = scmp.eq.s32.totalorder %s17, 1
    %p176 = por %p174, %p175
    %p177 = scmp.ne.s32.totalorder %s166, %s167
    %p178 = scmp.eq.s32.totalorder %s17, 0
    %p179 = por %p177, %p178
    %p180 = scmp.ne.s32.totalorder %s166, %s167
    %p181 = scmp.eq.s32.totalorder %s18, 1
    %p182 = por %p180, %p181
    %p184 = scmp.ne.s32.totalorder %s167, %s183
    %p185 = scmp.eq.s32.totalorder %s18, 0
    %p186 = por %p184, %p185
    %p187 = scmp.le.s32.totalorder 1, %s12
    %p188 = scmp.lt.s32.totalorder %s12, 3
    %p189 = pnand %p187, %p188
    %p190 = pneg %p189
    // Predicated region
    $region9: #{tpu_custom_call.1} parent=5 // pred_check
      _
    $region10: #{tpu_custom_call.1} parent=5 // pred_check_branch
      %192 = sbr.rel (%p189) target = $region12
    $region11: #{tpu_custom_call.1} parent=5 // pred_region
      %s193 = ssub.s32 %s12, 1
      // Predicated region
      $region13: #{tpu_custom_call.1} parent=11 // pred_check
        %p194 = pneg %p111
      $region14: #{tpu_custom_call.1} parent=11 // pred_check_branch
        %196 = sbr.rel (%p194) target = $region16
      $region15: #{tpu_custom_call.1} parent=11 // pred_region
        _
      $region16: #{tpu_custom_call.1} parent=11 // pred_fallthru
        _
      // Predicated region
      $region17: #{tpu_custom_call.1} parent=11 // pred_check
        %p197 = pneg %p132
      $region18: #{tpu_custom_call.1} parent=11 // pred_check_branch
        %199 = sbr.rel (%p197) target = $region20
      $region19: #{tpu_custom_call.1} parent=11 // pred_region
        _
      $region20: #{tpu_custom_call.1} parent=11 // pred_fallthru
        _
      // Predicated region
      $region21: #{tpu_custom_call.1} parent=11 // pred_check
        %p200 = pneg %p153
      $region22: #{tpu_custom_call.1} parent=11 // pred_check_branch
        %202 = sbr.rel (%p200) target = $region24
      $region23: #{tpu_custom_call.1} parent=11 // pred_region
        _
      $region24: #{tpu_custom_call.1} parent=11 // pred_fallthru
        _
    $region12: #{tpu_custom_call.1} parent=5 // pred_fallthru
      _
    %p203 = scmp.lt.s32.totalorder %s12, 2
    // Predicated region
    $region25: #{tpu_custom_call.1} parent=5 // pred_check
      %p204 = pneg %p203
    $region26: #{tpu_custom_call.1} parent=5 // pred_check_branch
      %206 = sbr.rel (%p204) target = $region28
    $region27: #{tpu_custom_call.1} parent=5 // pred_region
      // Predicated region
      $region29: #{tpu_custom_call.1} parent=27 // pred_check
        %p207 = pneg %p32
      $region30: #{tpu_custom_call.1} parent=27 // pred_check_branch
        %209 = sbr.rel (%p207) target = $region32
      $region31: #{tpu_custom_call.1} parent=27 // pred_region
        %p210 = scmp.lt.s32.totalorder %s12, 1
        %s211 = scalar_select %p210, %s12, 1
        %s212 = smul.addr %s211, 2
        %s213 = smul.addr %s212, 8
        %s214 = scalar_lea.vmem %s0, %s213
      $region32: #{tpu_custom_call.1} parent=27 // pred_fallthru
        _
      // Predicated region
      $region33: #{tpu_custom_call.1} parent=27 // pred_check
        %p215 = pneg %p58
      $region34: #{tpu_custom_call.1} parent=27 // pred_check_branch
        %217 = sbr.rel (%p215) target = $region36
      $region35: #{tpu_custom_call.1} parent=27 // pred_region
        %p218 = scmp.lt.s32.totalorder %s12, 1
        %s219 = scalar_select %p218, %s12, 1
        %s220 = smul.addr %s219, 2
        %s221 = smul.addr %s220, 8
        %s222 = scalar_lea.vmem %s1, %s221
      $region36: #{tpu_custom_call.1} parent=27 // pred_fallthru
        _
      // Predicated region
      $region37: #{tpu_custom_call.1} parent=27 // pred_check
        %p223 = pneg %p84
      $region38: #{tpu_custom_call.1} parent=27 // pred_check_branch
        %225 = sbr.rel (%p223) target = $region40
      $region39: #{tpu_custom_call.1} parent=27 // pred_region
        %p226 = scmp.lt.s32.totalorder %s12, 1
        %s227 = scalar_select %p226, %s12, 1
        %s228 = smul.addr %s227, 2
        %s229 = smul.addr %s228, 8
        %s230 = scalar_lea.vmem %s2, %s229
      $region40: #{tpu_custom_call.1} parent=27 // pred_fallthru
        _
    $region28: #{tpu_custom_call.1} parent=5 // pred_fallthru
      _
    %p231 = scmp.le.s32.totalorder 1, %s12
    %p232 = scmp.lt.s32.totalorder %s12, 3
    %p233 = pnand %p231, %p232
    %p234 = pneg %p233
    // Predicated region
    $region41: #{tpu_custom_call.1} parent=5 // pred_check
      _
    $region42: #{tpu_custom_call.1} parent=5 // pred_check_branch
      %236 = sbr.rel (%p233) target = $region44
    $region43: #{tpu_custom_call.1} parent=5 // pred_region
      %s237 = ssub.s32 %s12, 1
      %p238 = scmp.lt.s32.totalorder %s17, 1
      %s239 = scalar_select %p238, %s17, 1
      %s240 = smul.addr %s239, 2
      %s241 = smul.addr %s240, 8
      %s242 = scalar_lea.vmem %s0, %s241
      %p243 = pneg %p38
      %p244 = pneg %p35
      %p245 = scmp.lt.s32.totalorder %s17, 1
      %s246 = scalar_select %p245, %s17, 1
      %s247 = smul.addr %s246, 2
      %s248 = smul.addr %s247, 8
      %s249 = scalar_lea.vmem %s1, %s248
      %p250 = pneg %p64
      %p251 = pneg %p61
      %p252 = scmp.lt.s32.totalorder %s17, 1
      %s253 = scalar_select %p252, %s17, 1
      %s254 = smul.addr %s253, 2
      %s255 = smul.addr %s254, 8
      %s256 = scalar_lea.vmem %s2, %s255
      %p257 = pneg %p90
      %p258 = pneg %p87
      %p259 = pneg %p111
      %p260 = pneg %p108
      %p261 = pneg %p132
      %p262 = pneg %p129
      %p263 = pneg %p153
      %p264 = pneg %p150
      %p265 = pneg %p179
      %p266 = pneg %p176
      %p267 = scmp.lt.s32.totalorder %s17, 1
      %s268 = scalar_select %p267, %s17, 1
      %s269 = smul.addr %s268, 2
      %s270 = smul.addr %s269, 8
      %s271 = scalar_lea.vmem %s6, %s270
      %p272 = scmp.lt.s32.totalorder %s17, 1
      %s273 = scalar_select %p272, %s17, 1
      %s274 = smul.addr %s273, 2
      %s275 = smul.addr %s274, 8
      %s276 = scalar_lea.vmem %s0, %s275
      %p277 = scmp.lt.s32.totalorder %s17, 1
      %s278 = scalar_select %p277, %s17, 1
      %s279 = smul.addr %s278, 2
      %s280 = smul.addr %s279, 8
      %s281 = scalar_lea.vmem %s1, %s280
      %p282 = scmp.lt.s32.totalorder %s17, 1
      %s283 = scalar_select %p282, %s17, 1
      %s284 = smul.addr %s283, 2
      %s285 = smul.addr %s284, 8
      %s286 = scalar_lea.vmem %s2, %s285
      %p287 = scmp.lt.s32.totalorder %s17, 1
      %s288 = scalar_select %p287, %s17, 1
      %s289 = smul.addr %s288, 2
      %s290 = smul.addr %s289, 8
      %s291 = scalar_lea.vmem %s6, %s290
      %v293 = vld [vmem:[%s276] sm:$0xff]
      %v294 = vld [vmem:[%s276 + $0x8] sm:$0x7]
      %v295 = vld [vmem:[%s281] sm:$0xff]
      %v296 = vld [vmem:[%s281 + $0x8] sm:$0x7]
      %v297 = vld [vmem:[%s286] sm:$0xff]
      %v298 = vld [vmem:[%s286 + $0x8] sm:$0x7]
      %v299 = vld [vmem:[%s4] sm:$0xf]
      %v300 = vld [vmem:[%s4 + $0x4] sm:$0xf]
      %v301 = vld [vmem:[%s4 + $0x8] sm:$0xf]
      %v302 = vld [vmem:[%s4 + $0xc] sm:$0xf]
      %v303 = vld [vmem:[%s4 + $0x10] sm:$0xf]
      %v304 = vld [vmem:[%s4 + $0x14] sm:$0xf]
      %v305 = vld [vmem:[%s4 + $0x18] sm:$0xf]
      %v306 = vld [vmem:[%s4 + $0x1c] sm:$0xf]
      %v307 = vld [vmem:[%s4 + $0x20] sm:$0xf]
      %v308 = vld [vmem:[%s4 + $0x24] sm:$0xf]
      %v309 = vld [vmem:[%s4 + $0x28] sm:$0xf]
      %v310 = vld [vmem:[%s4 + $0x2c] sm:$0xf]
      %v311 = vld [vmem:[%s4 + $0x30] sm:$0xf]
      %v312 = vld [vmem:[%s4 + $0x34] sm:$0xf]
      %v313 = vld [vmem:[%s4 + $0x38] sm:$0xf]
      %v314 = vld [vmem:[%s4 + $0x3c] sm:$0xf]
      %v315 = vld [vmem:[%s5] sm:$0x3f]
      %vm316 = vcmask 1042432
      %v317 = vsel %vm316, %v294, 0.0
      %v318 = vsel %vm316, %v296, 0.0
      %v319 = vsel %vm316, %v298, 0.0
      %v320 = vpack.c.bf16 %v317, %v293
      %v321 = vperm.slane %v315, 0
      %v326 = vunpack.c.l.b16 %v299
      %v327 = vunpack.c.l.b16 %v300
      %v328 = vunpack.c.l.b16 %v301
      %v329 = vunpack.c.l.b16 %v302
      %v330 = vpack.c.b16 %v327, %v326
      %v331 = vpack.c.b16 %v329, %v328
      %vm334 = vcmask 261120
      %v336 = vsel %vm334, %v320, 0
      %338 = vmatpush.bf16.msra.mxu0 0
      %339 = vmatpush.bf16.msra.mxu0 0
      %340 = vmatpush.bf16.msra.mxu0 0
      %341 = vmatpush.bf16.msra.mxu0 0
      %342 = vmatpush.bf16.msra.mxu0 0
      %343 = vmatpush.bf16.msra.mxu0 0
      %344 = vmatpush.bf16.msra.mxu0 %v331
      %345 = vmatpush.bf16.msra.mxu0 %v330
      %346 = vmatmul.bf16.gmra.mxu0 %v336
      %v347 = vpop.f32.mrf.mxu0
      %v348 = vadd.f32 %v321, %v347
      %v349 = vpop.f32.mrf.mxu0
      %v350 = vadd.f32 %v321, %v349
      %351 = vdwg.mxu0
      %v352 = vpack.c.bf16 %v318, %v295
      %v353 = vperm.slane %v315, 1
      %v358 = vunpack.c.l.b16 %v303
      %v359 = vunpack.c.l.b16 %v304
      %v360 = vunpack.c.l.b16 %v305
      %v361 = vunpack.c.l.b16 %v306
      %v362 = vpack.c.b16 %v359, %v358
      %v363 = vpack.c.b16 %v361, %v360
      %v367 = vsel %vm334, %v352, 0
      %369 = vmatpush.bf16.msra.mxu0 0
      %370 = vmatpush.bf16.msra.mxu0 0
      %371 = vmatpush.bf16.msra.mxu0 0
      %372 = vmatpush.bf16.msra.mxu0 0
      %373 = vmatpush.bf16.msra.mxu0 0
      %374 = vmatpush.bf16.msra.mxu0 0
      %375 = vmatpush.bf16.msra.mxu0 %v363
      %376 = vmatpush.bf16.msra.mxu0 %v362
      %377 = vmatmul.bf16.gmra.mxu0 %v367
      %v378 = vpop.f32.mrf.mxu0
      %v379 = vadd.f32 %v353, %v378
      %v380 = vpop.f32.mrf.mxu0
      %v381 = vadd.f32 %v353, %v380
      %382 = vdwg.mxu0
      %v383 = vpack.c.bf16 %v319, %v297
      %v384 = vperm.slane %v315, 2
      %v389 = vunpack.c.l.b16 %v307
      %v390 = vunpack.c.l.b16 %v308
      %v391 = vunpack.c.l.b16 %v309
      %v392 = vunpack.c.l.b16 %v310
      %v393 = vpack.c.b16 %v390, %v389
      %v394 = vpack.c.b16 %v392, %v391
      %v398 = vsel %vm334, %v383, 0
      %400 = vmatpush.bf16.msra.mxu0 0
      %401 = vmatpush.bf16.msra.mxu0 0
      %402 = vmatpush.bf16.msra.mxu0 0
      %403 = vmatpush.bf16.msra.mxu0 0
      %404 = vmatpush.bf16.msra.mxu0 0
      %405 = vmatpush.bf16.msra.mxu0 0
      %406 = vmatpush.bf16.msra.mxu0 %v394
      %407 = vmatpush.bf16.msra.mxu0 %v393
      %408 = vmatmul.bf16.gmra.mxu0 %v398
      %v409 = vpop.f32.mrf.mxu0
      %v410 = vadd.f32 %v384, %v409
      %v411 = vpop.f32.mrf.mxu0
      %v412 = vadd.f32 %v384, %v411
      %413 = vdwg.mxu0
      %v414 = vld [vmem:[%s3] sm:$0xff]
      %v415 = vld [vmem:[%s3 + $0x8] sm:$0xff]
      %v416 = vpack.c.bf16 %v348, %v348
      %v417 = vpack.c.bf16 %v350, %v350
      %v418 = vpack.c.bf16 %v379, %v379
      %v419 = vpack.c.bf16 %v381, %v381
      %v420 = vpack.c.bf16 %v410, %v410
      %v421 = vpack.c.bf16 %v412, %v412
      %v424 = vunpack.c.l.b16 %v416
      %v425 = vunpack.c.l.b16 %v417
      %v426 = vpack.c.b16 %v425, %v424
      %v429 = vunpack.c.l.b16 %v418
      %v430 = vunpack.c.l.b16 %v419
      %v431 = vpack.c.b16 %v430, %v429
      %vm432 = vcmask 64512
      %v434 = vsel %vm432, %v426, 0
      %v437 = vsel %vm432, %v431, 0
      %439 = vmatpush.bf16.xpose.msra.mxu0 0
      %440 = vmatpush.bf16.xpose.msra.mxu0 0
      %441 = vmatpush.bf16.xpose.msra.mxu0 0
      %442 = vmatpush.bf16.xpose.msra.mxu0 0
      %443 = vmatpush.bf16.xpose.msra.mxu0 0
      %444 = vmatpush.bf16.xpose.msra.mxu0 0
      %445 = vmatpush.bf16.xpose.msra.mxu0 0
      %446 = vmatpush.bf16.xpose.msra.mxu0 %v437
      %447 = vmatmul.bf16.gmra.mxu0 %v434
      %v448 = vpop.f32.mrf.mxu0
      %v449 = vadd.f32 %v414, %v448
      %v450 = vpop.f32.mrf.mxu0
      %v451 = vadd.f32 %v415, %v450
      %452 = vdwg.mxu0
      %vm453 = vcmask 130048
      %v454 = vsel %vm453, %v449, -inf
      %455 = vmax.xlane.f32.xlu0 %v454
      %v456 = vpop.xlane.xlu0 %455
      %v457 = vsel %vm453, %v451, -inf
      %458 = vmax.xlane.f32.xlu0 %v457
      %v459 = vpop.xlane.xlu0 %458
      %v460 = vsub.f32 %v449, %v456
      %v461 = vsub.f32 %v451, %v459
      %v462 = vmul.f32 %v460, 1.442695
      %v463 = vpow.pop %v462
      %v464 = vmul.f32 %v461, 1.442695
      %v465 = vpow.pop %v464
      %v466 = vsel %vm453, %v463, 0.0
      %467 = vadd.xlane.f32.xlu0 %v466
      %v468 = vpop.xlane.xlu0 %467
      %v469 = vsel %vm453, %v465, 0.0
      %470 = vadd.xlane.f32.xlu0 %v469
      %v471 = vpop.xlane.xlu0 %470
      %v472 = vrcp.pop %v468
      %v473 = vrcp.pop %v471
      %v474 = vmul.f32 %v463, %v472
      %v475 = vmul.f32 %v465, %v473
      %v476 = vpack.c.bf16 %v474, %v474
      %v477 = vpack.c.bf16 %v475, %v475
      %v480 = vunpack.c.l.b16 %v476
      %v481 = vunpack.c.l.b16 %v477
      %v482 = vpack.c.b16 %v481, %v480
      %v485 = vunpack.c.l.b16 %v420
      %v486 = vunpack.c.l.b16 %v421
      %v487 = vpack.c.b16 %v486, %v485
      %v490 = vsel %vm453, %v482, 0
      %492 = vmatpush.bf16.msra.mxu0 0
      %493 = vmatpush.bf16.msra.mxu0 0
      %494 = vmatpush.bf16.msra.mxu0 0
      %495 = vmatpush.bf16.msra.mxu0 0
      %496 = vmatpush.bf16.msra.mxu0 0
      %497 = vmatpush.bf16.msra.mxu0 0
      %498 = vmatpush.bf16.msra.mxu0 0
      %499 = vmatpush.bf16.msra.mxu0 %v487
      %500 = vmatmul.bf16.gmra.mxu0 %v490
      %v501 = vpop.f32.mrf.mxu0
      %v502 = vadd.f32 0.0, %v501
      %v503 = vpop.f32.mrf.mxu0
      %v504 = vadd.f32 0.0, %v503
      %505 = vdwg.mxu0
      %v506 = vpack.c.bf16 %v504, %v502
      %507 = vrot.lane.b32.xlu0 %v426, 120
      %v508 = vpop.permute.xlu0 %507
      %509 = vrot.lane.b32.xlu0 %v431, 120
      %v510 = vpop.permute.xlu0 %509
      %v512 = vsel %vm432, %v508, 0
      %v515 = vsel %vm432, %v510, 0
      %517 = vmatpush.bf16.xpose.msra.mxu0 0
      %518 = vmatpush.bf16.xpose.msra.mxu0 0
      %519 = vmatpush.bf16.xpose.msra.mxu0 0
      %520 = vmatpush.bf16.xpose.msra.mxu0 0
      %521 = vmatpush.bf16.xpose.msra.mxu0 0
      %522 = vmatpush.bf16.xpose.msra.mxu0 0
      %523 = vmatpush.bf16.xpose.msra.mxu0 0
      %524 = vmatpush.bf16.xpose.msra.mxu0 %v515
      %525 = vmatmul.bf16.gmra.mxu0 %v512
      %v526 = vpop.f32.mrf.mxu0
      %v527 = vadd.f32 %v414, %v526
      %v528 = vpop.f32.mrf.mxu0
      %v529 = vadd.f32 %v415, %v528
      %530 = vdwg.mxu0
      %v531 = vsel %vm453, %v527, -inf
      %532 = vmax.xlane.f32.xlu0 %v531
      %v533 = vpop.xlane.xlu0 %532
      %v534 = vsel %vm453, %v529, -inf
      %535 = vmax.xlane.f32.xlu0 %v534
      %v536 = vpop.xlane.xlu0 %535
      %v537 = vsub.f32 %v527, %v533
      %v538 = vsub.f32 %v529, %v536
      %v539 = vmul.f32 %v537, 1.442695
      %v540 = vpow.pop %v539
      %v541 = vmul.f32 %v538, 1.442695
      %v542 = vpow.pop %v541
      %v543 = vsel %vm453, %v540, 0.0
      %544 = vadd.xlane.f32.xlu0 %v543
      %v545 = vpop.xlane.xlu0 %544
      %v546 = vsel %vm453, %v542, 0.0
      %547 = vadd.xlane.f32.xlu0 %v546
      %v548 = vpop.xlane.xlu0 %547
      %v549 = vrcp.pop %v545
      %v550 = vrcp.pop %v548
      %v551 = vmul.f32 %v540, %v549
      %v552 = vmul.f32 %v542, %v550
      %v553 = vpack.c.bf16 %v551, %v551
      %v554 = vpack.c.bf16 %v552, %v552
      %v557 = vunpack.c.l.b16 %v553
      %v558 = vunpack.c.l.b16 %v554
      %v559 = vpack.c.b16 %v558, %v557
      %560 = vrot.lane.b32.xlu0 %v487, 120
      %v561 = vpop.permute.xlu0 %560
      %v564 = vsel %vm453, %v559, 0
      %566 = vmatpush.bf16.msra.mxu0 0
      %567 = vmatpush.bf16.msra.mxu0 0
      %568 = vmatpush.bf16.msra.mxu0 0
      %569 = vmatpush.bf16.msra.mxu0 0
      %570 = vmatpush.bf16.msra.mxu0 0
      %571 = vmatpush.bf16.msra.mxu0 0
      %572 = vmatpush.bf16.msra.mxu0 0
      %573 = vmatpush.bf16.msra.mxu0 %v561
      %574 = vmatmul.bf16.gmra.mxu0 %v564
      %v575 = vpop.f32.mrf.mxu0
      %v576 = vadd.f32 0.0, %v575
      %v577 = vpop.f32.mrf.mxu0
      %v578 = vadd.f32 0.0, %v577
      %579 = vdwg.mxu0
      %v580 = vpack.c.bf16 %v578, %v576
      %v582 = vsel %vm432, %v580, 0
      %vm584 = vcmask 1043456
      %v586 = vsel %vm584, %v312, 0
      %588 = vmatpush.bf16.msra.mxu0 0
      %589 = vmatpush.bf16.msra.mxu0 0
      %590 = vmatpush.bf16.msra.mxu0 0
      %591 = vmatpush.bf16.msra.mxu0 0
      %592 = vmatpush.bf16.msra.mxu0 0
      %593 = vmatpush.bf16.msra.mxu0 0
      %594 = vmatpush.bf16.msra.mxu0 0
      %595 = vmatpush.bf16.msra.mxu0 %v586
      %596 = vmatmul.bf16.gmra.mxu0 %v582
      %v597 = vpop.f32.mrf.mxu0
      %v598 = vadd.f32 0.0, %v597
      %v599 = vpop.f32.mrf.mxu0
      %v600 = vadd.f32 0.0, %v599
      %601 = vdwg.mxu0
      %v603 = vsel %vm432, %v506, 0
      %v606 = vsel %vm584, %v311, 0
      %608 = vmatpush.bf16.msra.mxu0 0
      %609 = vmatpush.bf16.msra.mxu0 0
      %610 = vmatpush.bf16.msra.mxu0 0
      %611 = vmatpush.bf16.msra.mxu0 0
      %612 = vmatpush.bf16.msra.mxu0 0
      %613 = vmatpush.bf16.msra.mxu0 0
      %614 = vmatpush.bf16.msra.mxu0 0
      %615 = vmatpush.bf16.msra.mxu0 %v606
      %616 = vmatmul.bf16.gmra.mxu0 %v603
      %v617 = vpop.f32.mrf.mxu0
      %v618 = vadd.f32 %v598, %v617
      %v619 = vpop.f32.mrf.mxu0
      %v620 = vadd.f32 %v600, %v619
      %621 = vdwg.mxu0
      %622 = vrot.lane.b32.xlu0 %v426, 112
      %v623 = vpop.permute.xlu0 %622
      %624 = vrot.lane.b32.xlu0 %v431, 112
      %v625 = vpop.permute.xlu0 %624
      %v627 = vsel %vm432, %v623, 0
      %v630 = vsel %vm432, %v625, 0
      %632 = vmatpush.bf16.xpose.msra.mxu0 0
      %633 = vmatpush.bf16.xpose.msra.mxu0 0
      %634 = vmatpush.bf16.xpose.msra.mxu0 0
      %635 = vmatpush.bf16.xpose.msra.mxu0 0
      %636 = vmatpush.bf16.xpose.msra.mxu0 0
      %637 = vmatpush.bf16.xpose.msra.mxu0 0
      %638 = vmatpush.bf16.xpose.msra.mxu0 0
      %639 = vmatpush.bf16.xpose.msra.mxu0 %v630
      %640 = vmatmul.bf16.gmra.mxu0 %v627
      %v641 = vpop.f32.mrf.mxu0
      %v642 = vadd.f32 %v414, %v641
      %v643 = vpop.f32.mrf.mxu0
      %v644 = vadd.f32 %v415, %v643
      %645 = vdwg.mxu0
      %v646 = vsel %vm453, %v642, -inf
      %647 = vmax.xlane.f32.xlu0 %v646
      %v648 = vpop.xlane.xlu0 %647
      %v649 = vsel %vm453, %v644, -inf
      %650 = vmax.xlane.f32.xlu0 %v649
      %v651 = vpop.xlane.xlu0 %650
      %v652 = vsub.f32 %v642, %v648
      %v653 = vsub.f32 %v644, %v651
      %v654 = vmul.f32 %v652, 1.442695
      %v655 = vpow.pop %v654
      %v656 = vmul.f32 %v653, 1.442695
      %v657 = vpow.pop %v656
      %v658 = vsel %vm453, %v655, 0.0
      %659 = vadd.xlane.f32.xlu0 %v658
      %v660 = vpop.xlane.xlu0 %659
      %v661 = vsel %vm453, %v657, 0.0
      %662 = vadd.xlane.f32.xlu0 %v661
      %v663 = vpop.xlane.xlu0 %662
      %v664 = vrcp.pop %v660
      %v665 = vrcp.pop %v663
      %v666 = vmul.f32 %v655, %v664
      %v667 = vmul.f32 %v657, %v665
      %v668 = vpack.c.bf16 %v666, %v666
      %v669 = vpack.c.bf16 %v667, %v667
      %v672 = vunpack.c.l.b16 %v668
      %v673 = vunpack.c.l.b16 %v669
      %v674 = vpack.c.b16 %v673, %v672
      %675 = vrot.lane.b32.xlu0 %v487, 112
      %v676 = vpop.permute.xlu0 %675
      %v679 = vsel %vm453, %v674, 0
      %681 = vmatpush.bf16.msra.mxu0 0
      %682 = vmatpush.bf16.msra.mxu0 0
      %683 = vmatpush.bf16.msra.mxu0 0
      %684 = vmatpush.bf16.msra.mxu0 0
      %685 = vmatpush.bf16.msra.mxu0 0
      %686 = vmatpush.bf16.msra.mxu0 0
      %687 = vmatpush.bf16.msra.mxu0 0
      %688 = vmatpush.bf16.msra.mxu0 %v676
      %689 = vmatmul.bf16.gmra.mxu0 %v679
      %v690 = vpop.f32.mrf.mxu0
      %v691 = vadd.f32 0.0, %v690
      %v692 = vpop.f32.mrf.mxu0
      %v693 = vadd.f32 0.0, %v692
      %694 = vdwg.mxu0
      %v695 = vpack.c.bf16 %v693, %v691
      %v697 = vsel %vm432, %v695, 0
      %v700 = vsel %vm584, %v313, 0
      %702 = vmatpush.bf16.msra.mxu0 0
      %703 = vmatpush.bf16.msra.mxu0 0
      %704 = vmatpush.bf16.msra.mxu0 0
      %705 = vmatpush.bf16.msra.mxu0 0
      %706 = vmatpush.bf16.msra.mxu0 0
      %707 = vmatpush.bf16.msra.mxu0 0
      %708 = vmatpush.bf16.msra.mxu0 0
      %709 = vmatpush.bf16.msra.mxu0 %v700
      %710 = vmatmul.bf16.gmra.mxu0 %v697
      %v711 = vpop.f32.mrf.mxu0
      %v712 = vadd.f32 0.0, %v711
      %v713 = vpop.f32.mrf.mxu0
      %v714 = vadd.f32 0.0, %v713
      %715 = vdwg.mxu0
      %v716 = vadd.f32 %v618, %v712
      %v717 = vadd.f32 %v620, %v714
      %718 = vrot.lane.b32.xlu0 %v426, 104
      %v719 = vpop.permute.xlu0 %718
      %720 = vrot.lane.b32.xlu0 %v431, 104
      %v721 = vpop.permute.xlu0 %720
      %v723 = vsel %vm432, %v719, 0
      %v726 = vsel %vm432, %v721, 0
      %728 = vmatpush.bf16.xpose.msra.mxu0 0
      %729 = vmatpush.bf16.xpose.msra.mxu0 0
      %730 = vmatpush.bf16.xpose.msra.mxu0 0
      %731 = vmatpush.bf16.xpose.msra.mxu0 0
      %732 = vmatpush.bf16.xpose.msra.mxu0 0
      %733 = vmatpush.bf16.xpose.msra.mxu0 0
      %734 = vmatpush.bf16.xpose.msra.mxu0 0
      %735 = vmatpush.bf16.xpose.msra.mxu0 %v726
      %736 = vmatmul.bf16.gmra.mxu0 %v723
      %v737 = vpop.f32.mrf.mxu0
      %v738 = vadd.f32 %v414, %v737
      %v739 = vpop.f32.mrf.mxu0
      %v740 = vadd.f32 %v415, %v739
      %741 = vdwg.mxu0
      %v742 = vsel %vm453, %v738, -inf
      %743 = vmax.xlane.f32.xlu0 %v742
      %v744 = vpop.xlane.xlu0 %743
      %v745 = vsel %vm453, %v740, -inf
      %746 = vmax.xlane.f32.xlu0 %v745
      %v747 = vpop.xlane.xlu0 %746
      %v748 = vsub.f32 %v738, %v744
      %v749 = vsub.f32 %v740, %v747
      %v750 = vmul.f32 %v748, 1.442695
      %v751 = vpow.pop %v750
      %v752 = vmul.f32 %v749, 1.442695
      %v753 = vpow.pop %v752
      %v754 = vsel %vm453, %v751, 0.0
      %755 = vadd.xlane.f32.xlu0 %v754
      %v756 = vpop.xlane.xlu0 %755
      %v757 = vsel %vm453, %v753, 0.0
      %758 = vadd.xlane.f32.xlu0 %v757
      %v759 = vpop.xlane.xlu0 %758
      %v760 = vrcp.pop %v756
      %v761 = vrcp.pop %v759
      %v762 = vmul.f32 %v751, %v760
      %v763 = vmul.f32 %v753, %v761
      %v764 = vpack.c.bf16 %v762, %v762
      %v765 = vpack.c.bf16 %v763, %v763
      %v768 = vunpack.c.l.b16 %v764
      %v769 = vunpack.c.l.b16 %v765
      %v770 = vpack.c.b16 %v769, %v768
      %771 = vrot.lane.b32.xlu0 %v487, 104
      %v772 = vpop.permute.xlu0 %771
      %v775 = vsel %vm453, %v770, 0
      %777 = vmatpush.bf16.msra.mxu0 0
      %778 = vmatpush.bf16.msra.mxu0 0
      %779 = vmatpush.bf16.msra.mxu0 0
      %780 = vmatpush.bf16.msra.mxu0 0
      %781 = vmatpush.bf16.msra.mxu0 0
      %782 = vmatpush.bf16.msra.mxu0 0
      %783 = vmatpush.bf16.msra.mxu0 0
      %784 = vmatpush.bf16.msra.mxu0 %v772
      %785 = vmatmul.bf16.gmra.mxu0 %v775
      %v786 = vpop.f32.mrf.mxu0
      %v787 = vadd.f32 0.0, %v786
      %v788 = vpop.f32.mrf.mxu0
      %v789 = vadd.f32 0.0, %v788
      %790 = vdwg.mxu0
      %v791 = vpack.c.bf16 %v789, %v787
      %v793 = vsel %vm432, %v791, 0
      %v796 = vsel %vm584, %v314, 0
      %798 = vmatpush.bf16.msra.mxu0 0
      %799 = vmatpush.bf16.msra.mxu0 0
      %800 = vmatpush.bf16.msra.mxu0 0
      %801 = vmatpush.bf16.msra.mxu0 0
      %802 = vmatpush.bf16.msra.mxu0 0
      %803 = vmatpush.bf16.msra.mxu0 0
      %804 = vmatpush.bf16.msra.mxu0 0
      %805 = vmatpush.bf16.msra.mxu0 %v796
      %806 = vmatmul.bf16.gmra.mxu0 %v793
      %v807 = vpop.f32.mrf.mxu0
      %v808 = vadd.f32 0.0, %v807
      %v809 = vpop.f32.mrf.mxu0
      %v810 = vadd.f32 0.0, %v809
      %811 = vdwg.mxu0
      %v812 = vadd.f32 %v716, %v808
      %v813 = vadd.f32 %v717, %v810
      %v814 = vperm.slane %v315, 3
      %v815 = vadd.f32 %v812, %v814
      %v816 = vadd.f32 %v813, %v814
      %v817 = vadd.f32 %v293, %v815
      %v818 = vadd.f32 %v317, %v816
      %v819 = vsel %vm334, %v817, 0.0
      %820 = vadd.xlane.f32.xlu0 %v819
      %v821 = vpop.xlane.xlu0 %820
      %v822 = vsel %vm334, %v818, 0.0
      %823 = vadd.xlane.f32.xlu0 %v822
      %v824 = vpop.xlane.xlu0 %823
      %v825 = vrcp.pop 32.0
      %v826 = vmul.f32 32.0, %v825
      %v827 = vsub.f32 1.0, %v826
      %v828 = vmul.f32 %v825, %v827
      %v829 = vadd.f32 %v825, %v828
      %vm830 = vweird.f32 %v825
      %v831 = vsel %vm830, %v825, %v829
      %v832 = vmul.f32 %v821, %v831
      %v833 = vmul.f32 %v824, %v831
      %v834 = vsub.f32 %v817, %v832
      %v835 = vsub.f32 %v818, %v833
      %v836 = vmul.f32 %v834, %v834
      %v837 = vmul.f32 %v835, %v835
      %v838 = vsel %vm334, %v836, 0.0
      %839 = vadd.xlane.f32.xlu0 %v838
      %v840 = vpop.xlane.xlu0 %839
      %v841 = vsel %vm334, %v837, 0.0
      %842 = vadd.xlane.f32.xlu0 %v841
      %v843 = vpop.xlane.xlu0 %842
      %v844 = vmul.f32 %v840, %v831
      %v845 = vmul.f32 %v843, %v831
      %v846 = vadd.f32 %v844, 1e-05
      %v847 = vadd.f32 %v845, 1e-05
      %v848 = vrsqrt.pop %v846
      %v849 = vmul.f32 %v848, %v846
      %v850 = vmul.f32 %v849, %v848
      %v851 = vmul.f32 0.5, %v850
      %v852 = vsub.f32 1.5, %v851
      %v853 = vmul.f32 %v848, %v852
      %vm854 = vweird.f32 %v846
      %vm855 = vweird.f32 %v848
      %vm856 = vmor %vm854, %vm855
      %v857 = vsel %vm856, %v848, %v853
      %v858 = vrsqrt.pop %v847
      %v859 = vmul.f32 %v858, %v847
      %v860 = vmul.f32 %v859, %v858
      %v861 = vmul.f32 0.5, %v860
      %v862 = vsub.f32 1.5, %v861
      %v863 = vmul.f32 %v858, %v862
      %vm864 = vweird.f32 %v847
      %vm865 = vweird.f32 %v858
      %vm866 = vmor %vm864, %vm865
      %v867 = vsel %vm866, %v858, %v863
      %v868 = vmul.f32 %v834, %v857
      %v869 = vmul.f32 %v835, %v867
      %v870 = vperm.slane %v315, 4
      %v871 = vmul.f32 %v868, %v870
      %v872 = vmul.f32 %v869, %v870
      %v873 = vperm.slane %v315, 5
      %v874 = vadd.f32 %v871, %v873
      %v875 = vadd.f32 %v872, %v873
      %876 = vst.msk [vmem:[%s291] sm:$0xff] %vm334, %v874
      %vm877 = vcmask 256000
      %878 = vst.msk [vmem:[%s291 + $0x8] sm:$0x7] %vm877, %v875
      %p879 = scmp.lt.s32.totalorder %s17, 1
      %s880 = scalar_select %p879, %s17, 1
      %s881 = smul.addr %s880, 2
      %s882 = smul.addr %s881, 8
      %s883 = scalar_lea.vmem %s6, %s882
      // Predicated region
      $region45: #{tpu_custom_call.1} parent=43 // pred_check
        %p884 = pneg %p176
      $region46: #{tpu_custom_call.1} parent=43 // pred_check_branch
        %886 = sbr.rel (%p884) target = $region48
      $region47: #{tpu_custom_call.1} parent=43 // pred_region
        _
      $region48: #{tpu_custom_call.1} parent=43 // pred_fallthru
        _
    $region44: #{tpu_custom_call.1} parent=5 // pred_fallthru
      _
    %p887 = scmp.le.s32.totalorder 2, %s12
    // Predicated region
    $region49: #{tpu_custom_call.1} parent=5 // pred_check
      %p888 = pneg %p887
    $region50: #{tpu_custom_call.1} parent=5 // pred_check_branch
      %890 = sbr.rel (%p888) target = $region52
    $region51: #{tpu_custom_call.1} parent=5 // pred_region
      %s891 = ssub.s32 %s12, 2
      // Predicated region
      $region53: #{tpu_custom_call.1} parent=51 // pred_check
        %p892 = pneg %p182
      $region54: #{tpu_custom_call.1} parent=51 // pred_check_branch
        %894 = sbr.rel (%p892) target = $region56
      $region55: #{tpu_custom_call.1} parent=51 // pred_region
        %p895 = scmp.lt.s32.totalorder %s18, 1
        %s896 = scalar_select %p895, %s18, 1
        %s897 = smul.addr %s896, 2
        %s898 = smul.addr %s897, 8
        %s899 = scalar_lea.vmem %s6, %s898
      $region56: #{tpu_custom_call.1} parent=51 // pred_fallthru
        _
    $region52: #{tpu_custom_call.1} parent=5 // pred_fallthru
      _
  $region6: #{tpu_custom_call.1} parent=0 // loop_footer
    %s16 = sadd.s32 1, %s12
  $region7: #{tpu_custom_call.1} parent=0 // loop_footer_branch
    %11 = sbr.rel target = $region3
  $region8: #{tpu_custom_call.1} parent=0 // loop_exit
    _

</llo_original>
